<compile_context>
chip_gen: v7x
topology: tpu7x:2x2x1
jax: 0.10.0
libtpu: 0.0.40
codegen_flags: <defaults>
</compile_context>

<pallas_src>
import functools

import jax
import jax.numpy as jnp
from jax.experimental import pallas as pl
from jax.experimental.pallas import tpu as pltpu


def _ce_tile_kernel(x_ref, t_ref, o_ref, *, hw, ragged):
    # x_ref: (1, C, TS) logits tile (pixels on lanes, classes on sublanes)
    # t_ref: (1, 1, TS) int32 target class per pixel
    # o_ref: (1, 1, 1, 1) float32 per-tile partial sum
    ts = x_ref.shape[-1]

    x = x_ref[...].astype(jnp.float32)                      # (1, C, TS)
    tgt = t_ref[...]                                        # (1, 1, TS)

    # numerically-stable log-sum-exp over the class (sublane) axis
    m = jnp.max(x, axis=1, keepdims=True)                   # (1, 1, TS)
    lse = jnp.log(jnp.sum(jnp.exp(x - m), axis=1, keepdims=True)) + m

    # gather the target-class logit via compare+select over the class axis
    cls = jax.lax.broadcasted_iota(jnp.int32, x.shape, 1)   # (1, C, TS)
    tgt_logit = jnp.sum(jnp.where(cls == tgt, x, 0.0), axis=1, keepdims=True)

    loss = lse - tgt_logit                                  # (1, 1, TS)

    if ragged:
        # Only needed when HW is not a multiple of TS: one per-pixel select
        # zeroes the padded lanes.  Garbage/NaN/inf computed on those lanes
        # never propagates through the select, so no per-class masking of x
        # is required.
        pix = pl.program_id(1) * ts + jax.lax.broadcasted_iota(
            jnp.int32, (1, 1, ts), 2)
        loss = jnp.where(pix < hw, loss, 0.0)

    o_ref[...] = jnp.sum(loss).reshape(1, 1, 1, 1)


def _pick_tile_px(hw, c):
    # Target ~6 MiB (f32-equivalent) of logits per tile: big enough that the
    # ~0.35 us/step pipeline overhead is a few % of DMA time even on v7x,
    # small enough that the double-buffered working set (+ f32 temporaries)
    # stays well under a 48 MiB VMEM budget on every generation.
    target_bytes = 6 * 1024 * 1024
    ts = target_bytes // (4 * max(c, 1))
    ts = max(1024, min(131072, ts))       # lane-aligned px range
    ts = (ts // 128) * 128
    return min(ts, pl.cdiv(hw, 128) * 128)


@functools.partial(jax.jit, static_argnames=("tile_px",))
def cross_entropy_2d(predict, target, tile_px=None):
    """predict: (N, C, H, W) float; target: (N, H, W) int -> scalar float32."""
    n, c, h, w = predict.shape
    hw = h * w
    ts = _pick_tile_px(hw, c) if tile_px is None else tile_px
    grid_t = pl.cdiv(hw, ts)
    ragged = (hw % ts) != 0

    # Free, contiguous reshapes only (native NCHW layout; no transpose/pad).
    # Logits keep their native dtype (bf16 halves the dominant HBM traffic).
    x = predict.reshape(n, c, hw)
    t = target.reshape(n, 1, hw).astype(jnp.int32)

    partials = pl.pallas_call(
        functools.partial(_ce_tile_kernel, hw=hw, ragged=ragged),
        out_shape=jax.ShapeDtypeStruct((n, grid_t, 1, 1), jnp.float32),
        grid_spec=pltpu.PrefetchScalarGridSpec(
            num_scalar_prefetch=0,
            grid=(n, grid_t),
            in_specs=[
                pl.BlockSpec((1, c, ts), lambda i, j: (i, 0, j)),
                pl.BlockSpec((1, 1, ts), lambda i, j: (i, 0, j)),
            ],
            out_specs=pl.BlockSpec((1, 1, 1, 1), lambda i, j: (i, j, 0, 0)),
        ),
        compiler_params=pltpu.CompilerParams(
            dimension_semantics=("parallel", "parallel"),
            vmem_limit_bytes=48 << 20),
    )(x, t)

    # size_average=True (weight=None): mean over all N*H*W pixels
    return jnp.sum(partials) / jnp.float32(n * hw)


def _reference(predict, target):
    # pure-JAX reference for sanity checking
    n, c, h, w = predict.shape
    x = jnp.transpose(predict, (0, 2, 3, 1)).reshape(-1, c).astype(jnp.float32)
    t = target.reshape(-1).astype(jnp.int32)
    logp = jax.nn.log_softmax(x, axis=-1)
    return -jnp.mean(jnp.take_along_axis(logp, t[:, None], axis=-1))


if __name__ == "__main__":
    key = jax.random.PRNGKey(0)
    k1, k2 = jax.random.split(key)

    N, C, H, W = 2, 4, 16, 16
    predict = jax.random.normal(k1, (N, C, H, W), dtype=jnp.float32)
    target = jax.random.randint(k2, (N, H, W), 0, C, dtype=jnp.int32)

    loss = cross_entropy_2d(predict, target)
    loss = jax.block_until_ready(loss)

    ref = _reference(predict, target)
    assert jnp.allclose(loss, ref, rtol=1e-5, atol=1e-5), (loss, ref)

    # exercise the ragged-tile path too (HW not a multiple of the tile)
    H2, W2 = 23, 17
    p2 = jax.random.normal(k1, (N, C, H2, W2), dtype=jnp.float32)
    t2 = jax.random.randint(k2, (N, H2, W2), 0, C, dtype=jnp.int32)
    l2 = jax.block_until_ready(cross_entropy_2d(p2, t2, tile_px=256))
    assert jnp.allclose(l2, _reference(p2, t2), rtol=1e-5, atol=1e-5), l2

    print("KERNEL_OK")
</pallas_src>

<mosaic_0001>
module attributes {stable_mosaic.version = 11 : i64} {
  func.func @_ce_tile_kernel(%arg0: i32, %arg1: i32, %arg2: memref<1x4x256xf32, #tpu.memory_space<vmem>>, %arg3: memref<1x1x256xi32, #tpu.memory_space<vmem>>, %arg4: memref<1x1x1x1xf32, #tpu.memory_space<vmem>>) attributes {dimension_semantics = [#tpu.dimension_semantics<parallel>, #tpu.dimension_semantics<parallel>], iteration_bounds = array<i64: 2, 1>, scalar_prefetch = 0 : i64, scratch_operands = 0 : i64, tpu.core_type = #tpu.core_type<tc>, window_params = [{transform_indices = @transform_0, window_bounds = array<i64: 1, 4, 256>}, {transform_indices = @transform_1, window_bounds = array<i64: 1, 1, 256>}, {transform_indices = @transform_2, window_bounds = array<i64: 1, 1, 1, 1>}]} {
    %c0 = arith.constant 0 : index
    %c0_0 = arith.constant 0 : index
    %c0_1 = arith.constant 0 : index
    %0 = vector.load %arg2[%c0, %c0_0, %c0_1] : memref<1x4x256xf32, #tpu.memory_space<vmem>>, vector<1x4x256xf32>
    %c0_2 = arith.constant 0 : index
    %c0_3 = arith.constant 0 : index
    %c0_4 = arith.constant 0 : index
    %1 = vector.load %arg3[%c0_2, %c0_3, %c0_4] : memref<1x1x256xi32, #tpu.memory_space<vmem>>, vector<1x1x256xi32>
    %cst = arith.constant dense<0xFF800000> : vector<1x256xf32>
    %2 = vector.multi_reduction <maximumf>, %0, %cst [1] : vector<1x4x256xf32> to vector<1x256xf32>
    %3 = vector.shape_cast %2 : vector<1x256xf32> to vector<1x1x256xf32>
    %4 = vector.broadcast %3 : vector<1x1x256xf32> to vector<1x4x256xf32>
    %5 = arith.subf %0, %4 : vector<1x4x256xf32>
    %6 = math.exp %5 : vector<1x4x256xf32>
    %cst_5 = arith.constant dense<0.000000e+00> : vector<1x256xf32>
    %7 = vector.multi_reduction <add>, %6, %cst_5 [1] : vector<1x4x256xf32> to vector<1x256xf32>
    %8 = vector.shape_cast %7 : vector<1x256xf32> to vector<1x1x256xf32>
    %9 = math.log %8 : vector<1x1x256xf32>
    %10 = arith.addf %9, %3 : vector<1x1x256xf32>
    %11 = tpu.iota {dimensions = array<i32: 1>} : vector<1x4x256xi32>
    %12 = vector.broadcast %1 : vector<1x1x256xi32> to vector<1x4x256xi32>
    %13 = arith.cmpi eq, %11, %12 : vector<1x4x256xi32>
    %cst_6 = arith.constant 0.000000e+00 : f32
    %14 = vector.broadcast %cst_6 : f32 to vector<1x4x256xf32>
    %15 = arith.select %13, %0, %14 : vector<1x4x256xi1>, vector<1x4x256xf32>
    %cst_7 = arith.constant dense<0.000000e+00> : vector<1x256xf32>
    %16 = vector.multi_reduction <add>, %15, %cst_7 [1] : vector<1x4x256xf32> to vector<1x256xf32>
    %17 = vector.shape_cast %16 : vector<1x256xf32> to vector<1x1x256xf32>
    %18 = arith.subf %10, %17 : vector<1x1x256xf32>
    %19 = vector.shape_cast %18 : vector<1x1x256xf32> to vector<1x1x1x256xf32>
    %cst_8 = arith.constant dense<0.000000e+00> : vector<1xf32>
    %20 = vector.multi_reduction <add>, %19, %cst_8 [1, 2, 3] : vector<1x1x1x256xf32> to vector<1xf32>
    %21 = vector.shape_cast %20 : vector<1xf32> to vector<1x1x1x1xf32>
    %22 = vector.extract %21[0, 0, 0, 0] : f32 from vector<1x1x1x1xf32>
    %23 = vector.broadcast %22 : f32 to vector<1x1x1x1xf32>
    %c0_9 = arith.constant 0 : index
    %c0_10 = arith.constant 0 : index
    %c0_11 = arith.constant 0 : index
    %c0_12 = arith.constant 0 : index
    %24 = vector.load %arg4[%c0_9, %c0_10, %c0_11, %c0_12] : memref<1x1x1x1xf32, #tpu.memory_space<vmem>>, vector<1x1x1x1xf32>
    tpu.vector_store %arg4[%c0_9, %c0_10, %c0_11, %c0_12], %23 {strides = array<i32>} : memref<1x1x1x1xf32, #tpu.memory_space<vmem>>, vector<1x1x1x1xf32>,
    return
  }
  func.func @transform_0(%arg0: i32, %arg1: i32) -> (i32, i32, i32) {
    %c0_i32 = arith.constant 0 : i32
    %c0_i32_0 = arith.constant 0 : i32
    return %arg0, %c0_i32, %arg1 : i32, i32, i32
  }
  func.func @transform_1(%arg0: i32, %arg1: i32) -> (i32, i32, i32) {
    %c0_i32 = arith.constant 0 : i32
    %c0_i32_0 = arith.constant 0 : i32
    return %arg0, %c0_i32, %arg1 : i32, i32, i32
  }
  func.func @transform_2(%arg0: i32, %arg1: i32) -> (i32, i32, i32, i32) {
    %c0_i32 = arith.constant 0 : i32
    %c0_i32_0 = arith.constant 0 : i32
    %c0_i32_1 = arith.constant 0 : i32
    return %arg0, %arg1, %c0_i32, %c0_i32_0 : i32, i32, i32, i32
  }
}

</mosaic_0001>

<llo_original>
// kernel: cross_entropy_2d.1
$region0: #{cross_entropy_2d.1}
  #allocation0 [shape = 'u32[]', space=smem, size = 0x4, offset = 0x4, fixed_abs, tag = 'smem constant byte address 0x4 - core index']
  #allocation1 [shape = 'u32[144,128]{1,0:T(1,128)}', space=vmem, size = 0x12000, scoped, tag = 'internal scratch']
  %s0 = inlined_call_operand.vmem [shape: f32[2,4,256], index: 0, kind: input, shape index: {}]
  %s1 = inlined_call_operand.vmem [shape: s32[2,1,256], index: 1, kind: input, shape index: {}]
  %s2 = inlined_call_operand.vmem [shape: f32[2,1,1,1], index: 2, kind: output, shape index: {}]
  %s3 = sld [smem:[#allocation0]]
  $region41: #{cross_entropy_2d.1} parent=0
    _
  %s5 = ssub.s32 1, %s3
  %s6 = scalar_select 0, %s5, %s3
  loop: start=0, step=1, limit=4
  $region2: #{cross_entropy_2d.1} parent=0 // loop_pre_header
    _
  $region3: #{cross_entropy_2d.1} parent=0 // loop_header
    %s8 = sphi 0, %s12
    %p9 = scmp.ge.s32.totalorder %s8, 4
    %s15 = sphi 0, %s27
    %s16 = sphi 0, %s23
    %s17 = sphi 0, %s15
    %s18 = sphi 0, %s16
    %s19 = sphi 0, %s17
    %s20 = sphi 0, %s18
    %s32 = sphi 0, %s34
    %s35 = sphi 0, %s32
    %s36 = sphi 0, %s35
    %s52 = sphi 0, %s36
    %s60 = sphi 0, %s62
    %s63 = sphi 0, %s60
    %s64 = sphi 0, %s63
    %s80 = sphi 0, %s64
    %s88 = sphi 0, %s90
    %s91 = sphi 0, %s88
    %s92 = sphi 0, %s91
    %s108 = sphi 0, %s92
  $region4: #{cross_entropy_2d.1} parent=0 // loop_header_branch
    %11 = sbr.rel (%p9) target = $region8
  $region5: #{cross_entropy_2d.1} parent=0 // loop_body
    %s13 = ssub.s32 %s8, 1
    %s14 = ssub.s32 %s8, 2
    %s21 = sadd.s32 1, %s16
    %p22 = scmp.ge.s32.totalorder %s21, 1
    %s23 = scalar_select %p22, 0, %s21
    %s24 = sadd.s32 1, %s15
    %s25 = scalar_select %p22, %s24, %s15
    %p26 = scmp.ge.s32.totalorder %s25, 2
    %s27 = scalar_select %p26, 0, %s25
    %s28 = ssub.s32 %s15, %s27
    %s29 = ssub.s32 %s16, %s23
    %s30 = sor.u32 %s28, %s29
    %p31 = scmp.eq.s32.totalorder %s30, 0
    %s33 = sadd.s32 %s32, 1
    %s34 = scalar_select %p31, %s32, %s33
    %p37 = pneg %p31
    %p38 = scmp.eq.s32.totalorder %s8, 1
    %p39 = por %p37, %p38
    %p40 = scmp.ne.s32.totalorder %s32, %s35
    %p41 = scmp.eq.s32.totalorder %s8, 0
    %p42 = por %p40, %p41
    %p43 = scmp.ne.s32.totalorder %s32, %s35
    %p44 = scmp.eq.s32.totalorder %s13, 1
    %p45 = por %p43, %p44
    %p46 = scmp.ne.s32.totalorder %s35, %s36
    %p47 = scmp.eq.s32.totalorder %s13, 0
    %p48 = por %p46, %p47
    %p49 = scmp.ne.s32.totalorder %s35, %s36
    %p50 = scmp.eq.s32.totalorder %s14, 1
    %p51 = por %p49, %p50
    %p53 = scmp.ne.s32.totalorder %s36, %s52
    %p54 = scmp.eq.s32.totalorder %s14, 0
    %p55 = por %p53, %p54
    %s56 = ssub.s32 %s15, %s27
    %s57 = ssub.s32 %s16, %s23
    %s58 = sor.u32 %s56, %s57
    %p59 = scmp.eq.s32.totalorder %s58, 0
    %s61 = sadd.s32 %s60, 1
    %s62 = scalar_select %p59, %s60, %s61
    %p65 = pneg %p59
    %p66 = scmp.eq.s32.totalorder %s8, 1
    %p67 = por %p65, %p66
    %p68 = scmp.ne.s32.totalorder %s60, %s63
    %p69 = scmp.eq.s32.totalorder %s8, 0
    %p70 = por %p68, %p69
    %p71 = scmp.ne.s32.totalorder %s60, %s63
    %p72 = scmp.eq.s32.totalorder %s13, 1
    %p73 = por %p71, %p72
    %p74 = scmp.ne.s32.totalorder %s63, %s64
    %p75 = scmp.eq.s32.totalorder %s13, 0
    %p76 = por %p74, %p75
    %p77 = scmp.ne.s32.totalorder %s63, %s64
    %p78 = scmp.eq.s32.totalorder %s14, 1
    %p79 = por %p77, %p78
    %p81 = scmp.ne.s32.totalorder %s64, %s80
    %p82 = scmp.eq.s32.totalorder %s14, 0
    %p83 = por %p81, %p82
    %s84 = ssub.s32 %s15, %s27
    %s85 = ssub.s32 %s16, %s23
    %s86 = sor.u32 %s84, %s85
    %p87 = scmp.eq.s32.totalorder %s86, 0
    %s89 = sadd.s32 %s88, 1
    %s90 = scalar_select %p87, %s88, %s89
    %p93 = pneg %p87
    %p94 = scmp.eq.s32.totalorder %s8, 1
    %p95 = por %p93, %p94
    %p96 = scmp.ne.s32.totalorder %s88, %s91
    %p97 = scmp.eq.s32.totalorder %s8, 0
    %p98 = por %p96, %p97
    %p99 = scmp.ne.s32.totalorder %s88, %s91
    %p100 = scmp.eq.s32.totalorder %s13, 1
    %p101 = por %p99, %p100
    %p102 = scmp.ne.s32.totalorder %s91, %s92
    %p103 = scmp.eq.s32.totalorder %s13, 0
    %p104 = por %p102, %p103
    %p105 = scmp.ne.s32.totalorder %s91, %s92
    %p106 = scmp.eq.s32.totalorder %s14, 1
    %p107 = por %p105, %p106
    %p109 = scmp.ne.s32.totalorder %s92, %s108
    %p110 = scmp.eq.s32.totalorder %s14, 0
    %p111 = por %p109, %p110
    %p112 = scmp.le.s32.totalorder 1, %s8
    %p113 = scmp.lt.s32.totalorder %s8, 3
    %p114 = pnand %p112, %p113
    %p115 = pneg %p114
    // Predicated region
    $region9: #{cross_entropy_2d.1} parent=5 // pred_check
      _
    $region10: #{cross_entropy_2d.1} parent=5 // pred_check_branch
      %117 = sbr.rel (%p114) target = $region12
    $region11: #{cross_entropy_2d.1} parent=5 // pred_region
      %s118 = ssub.s32 %s8, 1
    $region12: #{cross_entropy_2d.1} parent=5 // pred_fallthru
      _
    %p119 = scmp.lt.s32.totalorder %s8, 2
    // Predicated region
    $region13: #{cross_entropy_2d.1} parent=5 // pred_check
      %p120 = pneg %p119
    $region14: #{cross_entropy_2d.1} parent=5 // pred_check_branch
      %122 = sbr.rel (%p120) target = $region16
    $region15: #{cross_entropy_2d.1} parent=5 // pred_region
      // Predicated region
      $region17: #{cross_entropy_2d.1} parent=15 // pred_check
        %p123 = pneg %p42
      $region18: #{cross_entropy_2d.1} parent=15 // pred_check_branch
        %125 = sbr.rel (%p123) target = $region20
      $region19: #{cross_entropy_2d.1} parent=15 // pred_region
        %s126 = smul.u32 2, %s16
        %p127 = scmp.lt.s32.totalorder %s15, 1
        %s128 = scalar_select %p127, %s15, 1
        %p129 = scmp.lt.s32.totalorder %s126, 1
        %s130 = scalar_select %p129, %s126, 1
        %s131 = smul.addr %s128, 2
        %s132 = sadd.s32 %s130, %s131
        %s133 = smul.addr %s132, 4
        %s134 = scalar_lea.vmem %s0, %s133
        %s135 = smul.u32 2, %s16
      $region20: #{cross_entropy_2d.1} parent=15 // pred_fallthru
        _
      // Predicated region
      $region21: #{cross_entropy_2d.1} parent=15 // pred_check
        %p136 = pneg %p70
      $region22: #{cross_entropy_2d.1} parent=15 // pred_check_branch
        %138 = sbr.rel (%p136) target = $region24
      $region23: #{cross_entropy_2d.1} parent=15 // pred_region
        %s139 = smul.u32 2, %s16
        %p140 = scmp.lt.s32.totalorder %s15, 1
        %s141 = scalar_select %p140, %s15, 1
        %p142 = scmp.lt.s32.totalorder %s139, 1
        %s143 = scalar_select %p142, %s139, 1
        %s144 = smul.addr %s141, 2
        %s145 = sadd.s32 %s143, %s144
        %s146 = scalar_lea.vmem %s1, %s145
        %s147 = smul.u32 2, %s16
      $region24: #{cross_entropy_2d.1} parent=15 // pred_fallthru
        _
    $region16: #{cross_entropy_2d.1} parent=5 // pred_fallthru
      _
    %p148 = scmp.le.s32.totalorder 1, %s8
    %p149 = scmp.lt.s32.totalorder %s8, 3
    %p150 = pnand %p148, %p149
    %p151 = pneg %p150
    // Predicated region
    $region25: #{cross_entropy_2d.1} parent=5 // pred_check
      _
    $region26: #{cross_entropy_2d.1} parent=5 // pred_check_branch
      %153 = sbr.rel (%p150) target = $region28
    $region27: #{cross_entropy_2d.1} parent=5 // pred_region
      %s154 = ssub.s32 %s8, 1
      %s155 = smul.u32 2, %s18
      %p156 = scmp.lt.s32.totalorder %s17, 1
      %s157 = scalar_select %p156, %s17, 1
      %p158 = scmp.lt.s32.totalorder %s155, 1
      %s159 = scalar_select %p158, %s155, 1
      %s160 = smul.addr %s157, 2
      %s161 = sadd.s32 %s159, %s160
      %s162 = smul.addr %s161, 4
      %s163 = scalar_lea.vmem %s0, %s162
      %p164 = pneg %p48
      %p165 = pneg %p45
      %s166 = smul.u32 2, %s18
      %p167 = scmp.lt.s32.totalorder %s17, 1
      %s168 = scalar_select %p167, %s17, 1
      %p169 = scmp.lt.s32.totalorder %s166, 1
      %s170 = scalar_select %p169, %s166, 1
      %s171 = smul.addr %s168, 2
      %s172 = sadd.s32 %s170, %s171
      %s173 = scalar_lea.vmem %s1, %s172
      %p174 = pneg %p76
      %p175 = pneg %p73
      %p176 = pneg %p104
      %p177 = pneg %p101
      %p178 = scmp.lt.s32.totalorder %s17, 1
      %s179 = scalar_select %p178, %s17, 1
      %p180 = scmp.lt.s32.totalorder %s18, 0
      %s181 = scalar_select %p180, %s18, 0
      %s182 = sadd.s32 %s181, %s179
      %s183 = scalar_lea.vmem %s2, %s182
      %s184 = smul.u32 2, %s18
      %p185 = scmp.lt.s32.totalorder %s17, 1
      %s186 = scalar_select %p185, %s17, 1
      %p187 = scmp.lt.s32.totalorder %s184, 1
      %s188 = scalar_select %p187, %s184, 1
      %s189 = smul.addr %s186, 2
      %s190 = sadd.s32 %s188, %s189
      %s191 = smul.addr %s190, 4
      %s192 = scalar_lea.vmem %s0, %s191
      %s193 = smul.u32 2, %s18
      %s194 = smul.u32 2, %s18
      %p195 = scmp.lt.s32.totalorder %s17, 1
      %s196 = scalar_select %p195, %s17, 1
      %p197 = scmp.lt.s32.totalorder %s194, 1
      %s198 = scalar_select %p197, %s194, 1
      %s199 = smul.addr %s196, 2
      %s200 = sadd.s32 %s198, %s199
      %s201 = scalar_lea.vmem %s1, %s200
      %s202 = smul.u32 2, %s18
      %p203 = scmp.lt.s32.totalorder %s17, 1
      %s204 = scalar_select %p203, %s17, 1
      %p205 = scmp.lt.s32.totalorder %s18, 0
      %s206 = scalar_select %p205, %s18, 0
      %s207 = sadd.s32 %s206, %s204
      %s208 = scalar_lea.vmem %s2, %s207
      %v209 = vld [vmem:[%s192] sm:$0xff]
      %v210 = vld [vmem:[%s201] sm:$0x3]
      %v212 = vcombine.high %v209, %v209
      %vm214 = vcmask 1043456
      %v215 = vsel %vm214, %v209, -inf
      %v216 = vrot.slane %v215, 4
      %v217 = vmax.f32 %v215, %v216
      %v218 = vrot.slane %v217, 2
      %v219 = vmax.f32 %v217, %v218
      %v220 = vrot.slane %v219, 1
      %v221 = vmax.f32 %v219, %v220
      %v222 = vsel %vm214, %v212, -inf
      %v223 = vrot.slane %v222, 4
      %v224 = vmax.f32 %v222, %v223
      %v225 = vrot.slane %v224, 2
      %v226 = vmax.f32 %v224, %v225
      %v227 = vrot.slane %v226, 1
      %v228 = vmax.f32 %v226, %v227
      %v231 = vcombine.low %v221, %v228
      %v233 = vsub.f32 %v209, %v231
      %v234 = vmul.f32 %v233, 1.442695
      %v235 = vpow.pop %v234
      %v237 = vcombine.high %v235, %v235
      %v239 = vsel %vm214, %v235, 0.0
      %v240 = vrot.slane %v239, 4
      %v241 = vadd.f32 %v239, %v240
      %v242 = vrot.slane %v241, 2
      %v243 = vadd.f32 %v241, %v242
      %v244 = vrot.slane %v243, 1
      %v245 = vadd.f32 %v243, %v244
      %v246 = vsel %vm214, %v237, 0.0
      %v247 = vrot.slane %v246, 4
      %v248 = vadd.f32 %v246, %v247
      %v249 = vrot.slane %v248, 2
      %v250 = vadd.f32 %v248, %v249
      %v251 = vrot.slane %v250, 1
      %v252 = vadd.f32 %v250, %v251
      %v253 = vlog2.pop %v245
      %v254 = vmul.f32 %v253, 0.6931472
      %v255 = vlog2.pop %v252
      %v256 = vmul.f32 %v255, 0.6931472
      %v257 = vadd.f32 %v254, %v221
      %v258 = vadd.f32 %v256, %v228
      %v259 = vlaneseq
      %v260 = vshrl.u32 %v259, 7
      %v261 = vlaneseq
      %v262 = vshrl.u32 %v261, 7
      %v263 = vsub.s32 0, %v262
      %v264 = vrot.slane %v210, %v263
      %v265 = vlaneseq
      %v266 = vshrl.u32 %v265, 7
      %v267 = vsub.s32 1, %v266
      %v268 = vrot.slane %v210, %v267
      %vm269 = vcmp.eq.s32.totalorder %v260, %v264
      %vm270 = vcmp.eq.s32.totalorder %v260, %v268
      %v271 = vsel %vm269, %v209, 0.0
      %v272 = vsel %vm270, %v212, 0.0
      %v273 = vsel %vm214, %v271, 0.0
      %v274 = vrot.slane %v273, 4
      %v275 = vadd.f32 %v273, %v274
      %v276 = vrot.slane %v275, 2
      %v277 = vadd.f32 %v275, %v276
      %v278 = vrot.slane %v277, 1
      %v279 = vadd.f32 %v277, %v278
      %v280 = vsel %vm214, %v272, 0.0
      %v281 = vrot.slane %v280, 4
      %v282 = vadd.f32 %v280, %v281
      %v283 = vrot.slane %v282, 2
      %v284 = vadd.f32 %v282, %v283
      %v285 = vrot.slane %v284, 1
      %v286 = vadd.f32 %v284, %v285
      %v287 = vsub.f32 %v257, %v279
      %v288 = vsub.f32 %v258, %v286
      %vm289 = vcmask 1040384
      %v290 = vsel %vm289, %v287, 0.0
      %v291 = vsel %vm289, %v288, 0.0
      %v292 = vadd.f32 %v290, %v291
      %293 = vadd.xlane.f32.xlu0 %v292
      %v294 = vpop.xlane.xlu0 %293
      %v295 = vrot.slane %v294, 4
      %v296 = vadd.f32 %v294, %v295
      %v297 = vrot.slane %v296, 2
      %v298 = vadd.f32 %v296, %v297
      %v299 = vrot.slane %v298, 1
      %v300 = vadd.f32 %v298, %v299
      %s301 = vtos %v300
      %v302 = vstv %s301
      %vm303 = vcmask 0
      %304 = vst.msk [vmem:[%s208] sm:$0x1] %vm303, %v302
      %p305 = scmp.lt.s32.totalorder %s17, 1
      %s306 = scalar_select %p305, %s17, 1
      %p307 = scmp.lt.s32.totalorder %s18, 0
      %s308 = scalar_select %p307, %s18, 0
      %s309 = sadd.s32 %s308, %s306
      %s310 = scalar_lea.vmem %s2, %s309
      // Predicated region
      $region29: #{cross_entropy_2d.1} parent=27 // pred_check
        %p311 = pneg %p101
      $region30: #{cross_entropy_2d.1} parent=27 // pred_check_branch
        %313 = sbr.rel (%p311) target = $region32
      $region31: #{cross_entropy_2d.1} parent=27 // pred_region
        _
      $region32: #{cross_entropy_2d.1} parent=27 // pred_fallthru
        _
    $region28: #{cross_entropy_2d.1} parent=5 // pred_fallthru
      _
    %p314 = scmp.le.s32.totalorder 2, %s8
    // Predicated region
    $region33: #{cross_entropy_2d.1} parent=5 // pred_check
      %p315 = pneg %p314
    $region34: #{cross_entropy_2d.1} parent=5 // pred_check_branch
      %317 = sbr.rel (%p315) target = $region36
    $region35: #{cross_entropy_2d.1} parent=5 // pred_region
      %s318 = ssub.s32 %s8, 2
      // Predicated region
      $region37: #{cross_entropy_2d.1} parent=35 // pred_check
        %p319 = pneg %p107
      $region38: #{cross_entropy_2d.1} parent=35 // pred_check_branch
        %321 = sbr.rel (%p319) target = $region40
      $region39: #{cross_entropy_2d.1} parent=35 // pred_region
        %p322 = scmp.lt.s32.totalorder %s19, 1
        %s323 = scalar_select %p322, %s19, 1
        %p324 = scmp.lt.s32.totalorder %s20, 0
        %s325 = scalar_select %p324, %s20, 0
        %s326 = sadd.s32 %s325, %s323
        %s327 = scalar_lea.vmem %s2, %s326
      $region40: #{cross_entropy_2d.1} parent=35 // pred_fallthru
        _
    $region36: #{cross_entropy_2d.1} parent=5 // pred_fallthru
      _
  $region6: #{cross_entropy_2d.1} parent=0 // loop_footer
    %s12 = sadd.s32 1, %s8
  $region7: #{cross_entropy_2d.1} parent=0 // loop_footer_branch
    %7 = sbr.rel target = $region3
  $region8: #{cross_entropy_2d.1} parent=0 // loop_exit
    _

</llo_original>
